<compile_context>
chip_gen: v7x
topology: tpu7x:2x2x1
jax: 0.10.0
libtpu: 0.0.40
codegen_flags: <defaults>
</compile_context>

<pallas_src>
import jax
import jax.numpy as jnp
from jax import lax
from jax.experimental import pallas as pl
from jax.experimental.pallas import tpu as pltpu


def _critic_kernel(x_ref, w1t_ref, b1_ref, w2_ref, b2_ref, o_ref):
    # x: (TB, S) native dtype | w1t: (Hp, S) | b1: (Hp, 1) f32 | w2: (1, Hp) f32
    # b2: (1,) f32 in SMEM    | o: (1, TB)
    x = x_ref[...]                 # no upcast: MXU takes bf16/f32 natively
    w1t = w1t_ref[...]
    # h_T[h, b] = sum_s W1[s, h] * x[b, s]  (NT matmul: contract S of both,
    # big operand `x` stays untransposed; result is lane-dense over the batch)
    h_t = lax.dot_general(w1t, x, (((1,), (1,)), ((), ())),
                          preferred_element_type=jnp.float32)      # (Hp, TB) f32
    h_t = jnp.maximum(h_t + b1_ref[...], 0.0)                      # bias + ReLU (VPU)
    # v_T = w2 @ h_T -> (1, TB): lane-dense output, no cross-lane reduce.
    v_t = jnp.dot(w2_ref[...], h_t, preferred_element_type=jnp.float32)
    o_ref[...] = (v_t + b2_ref[0]).astype(o_ref.dtype)


def critic_forward(state, w1, b1, w2, b2, *, max_block_rows=8192):
    """Pallas equivalent of Critic.forward: l2(relu(l1(state))).

    state: (B, state_num); w1: (state_num, 20); b1: (20,); w2: (20,); b2: (1,)
    Returns v of shape (B, 1).
    """
    B, S = state.shape
    H = w1.shape[1]
    assert w1.shape == (S, H) and b1.shape == (H,)
    assert w2.shape == (H,) and b2.shape == (1,)

    LANE = 128
    Hp = max(LANE, -(-H // LANE) * LANE)

    # Tiny one-time weight prep (no HBM pass over `state`):
    #  - W1 transposed + lane-padded, cast to the activation dtype (bf16-ready)
    #  - b1 as a (Hp, 1) f32 column, w2 as a (1, Hp) f32 row, b2 as f32 scalar
    w1t = jnp.zeros((Hp, S), state.dtype).at[:H, :].set(w1.T.astype(state.dtype))
    b1c = jnp.zeros((Hp, 1), jnp.float32).at[:H, 0].set(b1.astype(jnp.float32))
    w2r = jnp.zeros((1, Hp), jnp.float32).at[0, :H].set(w2.astype(jnp.float32))
    b2s = b2.astype(jnp.float32).reshape(1)

    # Row tiling: whole batch as one block when small; otherwise big tiles,
    # capped so the grid has >= 2 "parallel" steps (v7x megacore) and block_b
    # is a multiple of 128 (lane-dense output blocks). No padding of state:
    # the ragged edge block is handled by Pallas write masking.
    max_block_rows = max(LANE, (max_block_rows // LANE) * LANE)
    if B <= 1024:
        block_b = B
    else:
        half = -(-B // 2)
        block_b = min(max_block_rows, -(-half // LANE) * LANE)
    grid = (pl.cdiv(B, block_b),)

    out = pl.pallas_call(
        _critic_kernel,
        out_shape=jax.ShapeDtypeStruct((1, B), state.dtype),
        grid_spec=pltpu.PrefetchScalarGridSpec(
            num_scalar_prefetch=0,
            grid=grid,
            in_specs=[
                pl.BlockSpec((block_b, S), lambda i: (i, 0)),        # state rows
                pl.BlockSpec((Hp, S), lambda i: (0, 0)),             # W1^T (resident)
                pl.BlockSpec((Hp, 1), lambda i: (0, 0)),             # b1 column
                pl.BlockSpec((1, Hp), lambda i: (0, 0)),             # w2 row
                pl.BlockSpec(memory_space=pltpu.MemorySpace.SMEM),   # b2 scalar
            ],
            out_specs=pl.BlockSpec((1, block_b), lambda i: (0, i)),  # lane-dense
        ),
        compiler_params=pltpu.CompilerParams(
            dimension_semantics=("parallel",),
            vmem_limit_bytes=48 * 1024 * 1024,
        ),
    )(state, w1t, b1c, w2r, b2s)
    return out.reshape(B, 1)


def _reference(state, w1, b1, w2, b2):
    h = jnp.maximum(state @ w1 + b1, 0.0)
    return h @ w2.reshape(-1, 1) + b2


if __name__ == "__main__":
    key = jax.random.PRNGKey(0)
    k_state, k_w1, k_b1, k_w2, k_b2, k_big = jax.random.split(key, 6)

    batch, state_num, action_num, hidden = 8, 32, 4, 20
    # NOTE: Critic.__init__ also builds l11 = Linear(action_num, 20), but it is
    # never used in forward(), so it has no kernel counterpart.
    state = jax.random.normal(k_state, (batch, state_num), dtype=jnp.float32)
    w1 = jax.random.normal(k_w1, (state_num, hidden), dtype=jnp.float32) * 0.1
    b1 = jax.random.normal(k_b1, (hidden,), dtype=jnp.float32) * 0.1
    w2 = jax.random.normal(k_w2, (hidden,), dtype=jnp.float32) * 0.1
    b2 = jax.random.normal(k_b2, (1,), dtype=jnp.float32) * 0.1

    # Small-batch path (single block).
    v = critic_forward(state, w1, b1, w2, b2)
    jax.block_until_ready(v)
    ref = _reference(state, w1, b1, w2, b2)
    assert v.shape == (batch, 1)
    assert jnp.allclose(v, ref, rtol=1e-5, atol=1e-5), (v, ref)

    # Multi-step path with a ragged edge block (exercises >=2 parallel steps
    # and the pad-free edge masking).
    big_b = 2000
    state_big = jax.random.normal(k_big, (big_b, state_num), dtype=jnp.float32)
    v_big = critic_forward(state_big, w1, b1, w2, b2)
    jax.block_until_ready(v_big)
    ref_big = _reference(state_big, w1, b1, w2, b2)
    assert v_big.shape == (big_b, 1)
    assert jnp.allclose(v_big, ref_big, rtol=1e-5, atol=1e-5)

    print("KERNEL_OK")
</pallas_src>

<mosaic_0001>
module attributes {stable_mosaic.version = 11 : i64} {
  func.func @_critic_kernel(%arg0: i32, %arg1: memref<8x32xf32, #tpu.memory_space<vmem>>, %arg2: memref<128x32xf32, #tpu.memory_space<vmem>>, %arg3: memref<128x1xf32, #tpu.memory_space<vmem>>, %arg4: memref<1x128xf32, #tpu.memory_space<vmem>>, %arg5: memref<1xf32, #tpu.memory_space<smem>>, %arg6: memref<1x8xf32, #tpu.memory_space<vmem>>) attributes {dimension_semantics = [#tpu.dimension_semantics<parallel>], iteration_bounds = array<i64: 1>, scalar_prefetch = 0 : i64, scratch_operands = 0 : i64, tpu.core_type = #tpu.core_type<tc>, window_params = [{transform_indices = @transform_0, window_bounds = array<i64: 8, 32>}, {pipeline_mode = #tpu.pipeline_mode<synchronous>, transform_indices = @transform_1, window_bounds = array<i64: 128, 32>}, {pipeline_mode = #tpu.pipeline_mode<synchronous>, transform_indices = @transform_2, window_bounds = array<i64: 128, 1>}, {pipeline_mode = #tpu.pipeline_mode<synchronous>, transform_indices = @transform_3, window_bounds = array<i64: 1, 128>}, {transform_indices = @transform_4, window_bounds = array<i64: 1>}, {transform_indices = @transform_5, window_bounds = array<i64: 1, 8>}]} {
    %c0 = arith.constant 0 : index
    %c0_0 = arith.constant 0 : index
    %0 = vector.load %arg1[%c0, %c0_0] : memref<8x32xf32, #tpu.memory_space<vmem>>, vector<8x32xf32>
    %c0_1 = arith.constant 0 : index
    %c0_2 = arith.constant 0 : index
    %1 = vector.load %arg2[%c0_1, %c0_2] : memref<128x32xf32, #tpu.memory_space<vmem>>, vector<128x32xf32>
    %cst = arith.constant dense<0.000000e+00> : vector<128x8xf32>
    %2 = tpu.matmul %1, %0, %cst {dimension_numbers = #tpu.dot_dimension_numbers<[1], [1], [0], [0], [0, 0, 1, 0], [], []>} : vector<128x32xf32>, vector<8x32xf32>, vector<128x8xf32> -> vector<128x8xf32>
    %c0_3 = arith.constant 0 : index
    %c0_4 = arith.constant 0 : index
    %3 = vector.load %arg3[%c0_3, %c0_4] : memref<128x1xf32, #tpu.memory_space<vmem>>, vector<128x1xf32>
    %4 = vector.broadcast %3 : vector<128x1xf32> to vector<128x8xf32>
    %5 = arith.addf %2, %4 : vector<128x8xf32>
    %cst_5 = arith.constant 0.000000e+00 : f32
    %6 = vector.broadcast %cst_5 : f32 to vector<128x8xf32>
    %7 = arith.maximumf %5, %6 : vector<128x8xf32>
    %c0_6 = arith.constant 0 : index
    %c0_7 = arith.constant 0 : index
    %8 = vector.load %arg4[%c0_6, %c0_7] : memref<1x128xf32, #tpu.memory_space<vmem>>, vector<1x128xf32>
    %cst_8 = arith.constant dense<0.000000e+00> : vector<1x8xf32>
    %9 = tpu.matmul %8, %7, %cst_8 {dimension_numbers = #tpu.dot_dimension_numbers<[1], [0], [0], [1], [0, 0, 1, 1], [], []>} : vector<1x128xf32>, vector<128x8xf32>, vector<1x8xf32> -> vector<1x8xf32>
    %c0_9 = arith.constant 0 : index
    %10 = memref.load %arg5[%c0_9] : memref<1xf32, #tpu.memory_space<smem>>
    %11 = vector.broadcast %10 : f32 to vector<1x8xf32>
    %12 = arith.addf %9, %11 : vector<1x8xf32>
    %c0_10 = arith.constant 0 : index
    %c0_11 = arith.constant 0 : index
    %13 = vector.load %arg6[%c0_10, %c0_11] : memref<1x8xf32, #tpu.memory_space<vmem>>, vector<1x8xf32>
    tpu.vector_store %arg6[%c0_10, %c0_11], %12 {strides = array<i32>} : memref<1x8xf32, #tpu.memory_space<vmem>>, vector<1x8xf32>,
    return
  }
  func.func @transform_0(%arg0: i32) -> (i32, i32) {
    %c0_i32 = arith.constant 0 : i32
    %c0_i32_0 = arith.constant 0 : i32
    return %arg0, %c0_i32 : i32, i32
  }
  func.func @transform_1(%arg0: i32) -> (i32, i32) {
    %c0_i32 = arith.constant 0 : i32
    %c0_i32_0 = arith.constant 0 : i32
    %c0_i32_1 = arith.constant 0 : i32
    return %c0_i32, %c0_i32_0 : i32, i32
  }
  func.func @transform_2(%arg0: i32) -> (i32, i32) {
    %c0_i32 = arith.constant 0 : i32
    %c0_i32_0 = arith.constant 0 : i32
    %c0_i32_1 = arith.constant 0 : i32
    return %c0_i32, %c0_i32_0 : i32, i32
  }
  func.func @transform_3(%arg0: i32) -> (i32, i32) {
    %c0_i32 = arith.constant 0 : i32
    %c0_i32_0 = arith.constant 0 : i32
    %c0_i32_1 = arith.constant 0 : i32
    return %c0_i32, %c0_i32_0 : i32, i32
  }
  func.func @transform_4(%arg0: i32) -> i32 {
    %c0_i32 = arith.constant 0 : i32
    %c0_i32_0 = arith.constant 0 : i32
    return %c0_i32 : i32
  }
  func.func @transform_5(%arg0: i32) -> (i32, i32) {
    %c0_i32 = arith.constant 0 : i32
    %c0_i32_0 = arith.constant 0 : i32
    return %c0_i32, %arg0 : i32, i32
  }
}

</mosaic_0001>

<llo_original>
// kernel: tpu_custom_call.1
$region0: #{tpu_custom_call.1}
  #allocation0 [shape = 'u32[]', space=smem, size = 0x4, offset = 0x4, fixed_abs, tag = 'smem constant byte address 0x4 - core index']
  #allocation1 [shape = 'u32[144,128]{1,0:T(1,128)}', space=vmem, size = 0x12000, scoped, tag = 'internal scratch']
  #allocation2 [shape = 'f32[1]{0:T(128)S(6)}', space=smem, size = 0x200, scoped, tag = 'scoped memory for tpu_custom_call.1']
  %s0 = inlined_call_operand.vmem [shape: f32[8,32], index: 0, kind: input, shape index: {}]
  %s1 = inlined_call_operand.vmem [shape: f32[128,32], index: 1, kind: input, shape index: {}]
  %s2 = inlined_call_operand.vmem [shape: f32[128,1], index: 2, kind: input, shape index: {}]
  %s3 = inlined_call_operand.vmem [shape: f32[1,128], index: 3, kind: input, shape index: {}]
  %s4 = inlined_call_operand.<no memory space> [shape: f32[1], index: 4, kind: input, shape index: {}]
  %s5 = inlined_call_operand.hbm [shape: f32[1,8], index: 5, kind: output, shape index: {}]
  %s6 = sld [smem:[#allocation0]]
  $region30: #{tpu_custom_call.1} parent=0
    _
  %s8 = ssub.s32 1, %s6
  %s9 = scalar_select 0, %s8, %s6
  %10 = sst [smem:[#allocation2]] %s4
  $region1: #{tpu_custom_call.1} parent=0
    #allocation3 [shape = 'u8[512]{0}', space=vmem, size = 0x400, scoped, tag = 'output window, operand 0, single buffered']
    #allocation4 [shape = 's32[1]{0}', space=sflag, size = 0x4, scoped, tag = 'scoped memory for tpu_custom_call.1']
    %11 = vsyncpa [#allocation4], 0
    // Predicated region
    $region2: #{tpu_custom_call.1} parent=1 // pred_check
      _
    $region3: #{tpu_custom_call.1} parent=1 // pred_check_branch
      %13 = sbr.rel (0) target = $region5
    $region4: #{tpu_custom_call.1} parent=1 // pred_region
      _
    $region5: #{tpu_custom_call.1} parent=1 // pred_fallthru
      _
    // Predicated region
    $region6: #{tpu_custom_call.1} parent=1 // pred_check
      _
    $region7: #{tpu_custom_call.1} parent=1 // pred_check_branch
      %15 = sbr.rel (0) target = $region9
    $region8: #{tpu_custom_call.1} parent=1 // pred_region
      _
    $region9: #{tpu_custom_call.1} parent=1 // pred_fallthru
      _
    // Predicated region
    $region10: #{tpu_custom_call.1} parent=1 // pred_check
      _
    $region11: #{tpu_custom_call.1} parent=1 // pred_check_branch
      %17 = sbr.rel (0) target = $region13
    $region12: #{tpu_custom_call.1} parent=1 // pred_region
      _
    $region13: #{tpu_custom_call.1} parent=1 // pred_fallthru
      _
    // Predicated region
    $region14: #{tpu_custom_call.1} parent=1 // pred_check
      _
    $region15: #{tpu_custom_call.1} parent=1 // pred_check_branch
      %19 = sbr.rel (0) target = $region17
    $region16: #{tpu_custom_call.1} parent=1 // pred_region
      _
    $region17: #{tpu_custom_call.1} parent=1 // pred_fallthru
      _
    // Predicated region
    $region18: #{tpu_custom_call.1} parent=1 // pred_check
      _
    $region19: #{tpu_custom_call.1} parent=1 // pred_check_branch
      %21 = sbr.rel (0) target = $region21
    $region20: #{tpu_custom_call.1} parent=1 // pred_region
      _
    $region21: #{tpu_custom_call.1} parent=1 // pred_fallthru
      _
    %v22 = vld [vmem:[%s0] sm:$0xff]
    %v23 = vld [vmem:[%s1] sm:$0xff]
    %v24 = vld [vmem:[%s1 + $0x8] sm:$0xff]
    %v25 = vld [vmem:[%s1 + $0x10] sm:$0xff]
    %v26 = vld [vmem:[%s1 + $0x18] sm:$0xff]
    %v27 = vld [vmem:[%s1 + $0x20] sm:$0xff]
    %v28 = vld [vmem:[%s1 + $0x28] sm:$0xff]
    %v29 = vld [vmem:[%s1 + $0x30] sm:$0xff]
    %v30 = vld [vmem:[%s1 + $0x38] sm:$0xff]
    %v31 = vld [vmem:[%s1 + $0x40] sm:$0xff]
    %v32 = vld [vmem:[%s1 + $0x48] sm:$0xff]
    %v33 = vld [vmem:[%s1 + $0x50] sm:$0xff]
    %v34 = vld [vmem:[%s1 + $0x58] sm:$0xff]
    %v35 = vld [vmem:[%s1 + $0x60] sm:$0xff]
    %v36 = vld [vmem:[%s1 + $0x68] sm:$0xff]
    %v37 = vld [vmem:[%s1 + $0x70] sm:$0xff]
    %v38 = vld [vmem:[%s1 + $0x78] sm:$0xff]
    %v39 = vld [vmem:[%s2] sm:$0xff]
    %v40 = vld [vmem:[%s2 + $0x8] sm:$0xff]
    %v41 = vld [vmem:[%s2 + $0x10] sm:$0xff]
    %v42 = vld [vmem:[%s2 + $0x18] sm:$0xff]
    %v43 = vld [vmem:[%s2 + $0x20] sm:$0xff]
    %v44 = vld [vmem:[%s2 + $0x28] sm:$0xff]
    %v45 = vld [vmem:[%s2 + $0x30] sm:$0xff]
    %v46 = vld [vmem:[%s2 + $0x38] sm:$0xff]
    %v47 = vld [vmem:[%s2 + $0x40] sm:$0xff]
    %v48 = vld [vmem:[%s2 + $0x48] sm:$0xff]
    %v49 = vld [vmem:[%s2 + $0x50] sm:$0xff]
    %v50 = vld [vmem:[%s2 + $0x58] sm:$0xff]
    %v51 = vld [vmem:[%s2 + $0x60] sm:$0xff]
    %v52 = vld [vmem:[%s2 + $0x68] sm:$0xff]
    %v53 = vld [vmem:[%s2 + $0x70] sm:$0xff]
    %v54 = vld [vmem:[%s2 + $0x78] sm:$0xff]
    %56 = vset.pattern.permute.xlu0 0
    %57 = vperm.xlu0 %56, %v39
    %v58 = vpop.permute.xlu0 %57
    %61 = vset.pattern.permute.xlu0 0
    %62 = vperm.xlu0 %61, %v40
    %v63 = vpop.permute.xlu0 %62
    %66 = vset.pattern.permute.xlu0 0
    %67 = vperm.xlu0 %66, %v41
    %v68 = vpop.permute.xlu0 %67
    %71 = vset.pattern.permute.xlu0 0
    %72 = vperm.xlu0 %71, %v42
    %v73 = vpop.permute.xlu0 %72
    %76 = vset.pattern.permute.xlu0 0
    %77 = vperm.xlu0 %76, %v43
    %v78 = vpop.permute.xlu0 %77
    %81 = vset.pattern.permute.xlu0 0
    %82 = vperm.xlu0 %81, %v44
    %v83 = vpop.permute.xlu0 %82
    %86 = vset.pattern.permute.xlu0 0
    %87 = vperm.xlu0 %86, %v45
    %v88 = vpop.permute.xlu0 %87
    %91 = vset.pattern.permute.xlu0 0
    %92 = vperm.xlu0 %91, %v46
    %v93 = vpop.permute.xlu0 %92
    %96 = vset.pattern.permute.xlu0 0
    %97 = vperm.xlu0 %96, %v47
    %v98 = vpop.permute.xlu0 %97
    %101 = vset.pattern.permute.xlu0 0
    %102 = vperm.xlu0 %101, %v48
    %v103 = vpop.permute.xlu0 %102
    %106 = vset.pattern.permute.xlu0 0
    %107 = vperm.xlu0 %106, %v49
    %v108 = vpop.permute.xlu0 %107
    %111 = vset.pattern.permute.xlu0 0
    %112 = vperm.xlu0 %111, %v50
    %v113 = vpop.permute.xlu0 %112
    %116 = vset.pattern.permute.xlu0 0
    %117 = vperm.xlu0 %116, %v51
    %v118 = vpop.permute.xlu0 %117
    %121 = vset.pattern.permute.xlu0 0
    %122 = vperm.xlu0 %121, %v52
    %v123 = vpop.permute.xlu0 %122
    %126 = vset.pattern.permute.xlu0 0
    %127 = vperm.xlu0 %126, %v53
    %v128 = vpop.permute.xlu0 %127
    %131 = vset.pattern.permute.xlu0 0
    %132 = vperm.xlu0 %131, %v54
    %v133 = vpop.permute.xlu0 %132
    %vm135 = vcmask 261120
    %v137 = vsel %vm135, %v23, 0
    %v140 = vsel %vm135, %v24, 0
    %v143 = vsel %vm135, %v25, 0
    %v146 = vsel %vm135, %v26, 0
    %v149 = vsel %vm135, %v27, 0
    %v152 = vsel %vm135, %v28, 0
    %v155 = vsel %vm135, %v29, 0
    %v158 = vsel %vm135, %v30, 0
    %v161 = vsel %vm135, %v31, 0
    %v164 = vsel %vm135, %v32, 0
    %v167 = vsel %vm135, %v33, 0
    %v170 = vsel %vm135, %v34, 0
    %v173 = vsel %vm135, %v35, 0
    %v176 = vsel %vm135, %v36, 0
    %v179 = vsel %vm135, %v37, 0
    %v182 = vsel %vm135, %v38, 0
    %v185 = vsel %vm135, %v22, 0
    %187 = vmatprep.subr.mxu0 0.0
    %188 = vmatpush1.xpose.msra.mxu0 %v185
    %189 = vmatprep.subr.mxu0 0.0
    %190 = vmatpush1.xpose.msra.mxu0 0.0
    %191 = vmatprep.subr.mxu0 0.0
    %192 = vmatpush1.xpose.msra.mxu0 0.0
    %193 = vmatprep.subr.mxu0 0.0
    %194 = vmatpush1.xpose.msra.mxu0 0.0
    %195 = vmatprep.subr.mxu0 0.0
    %196 = vmatpush1.xpose.msra.mxu0 0.0
    %197 = vmatprep.subr.mxu0 0.0
    %198 = vmatpush1.xpose.msra.mxu0 0.0
    %199 = vmatprep.subr.mxu0 0.0
    %200 = vmatpush1.xpose.msra.mxu0 0.0
    %201 = vmatprep.subr.mxu0 0.0
    %202 = vmatpush1.xpose.msra.mxu0 0.0
    %203 = vmatprep.subr.mxu0 0.0
    %204 = vmatpush1.xpose.msra.mxu0 0.0
    %205 = vmatprep.subr.mxu0 0.0
    %206 = vmatpush1.xpose.msra.mxu0 0.0
    %207 = vmatprep.subr.mxu0 0.0
    %208 = vmatpush1.xpose.msra.mxu0 0.0
    %209 = vmatprep.subr.mxu0 0.0
    %210 = vmatpush1.xpose.msra.mxu0 0.0
    %211 = vmatprep.subr.mxu0 0.0
    %212 = vmatpush1.xpose.msra.mxu0 0.0
    %213 = vmatprep.subr.mxu0 0.0
    %214 = vmatpush1.xpose.msra.mxu0 0.0
    %215 = vmatprep.subr.mxu0 0.0
    %216 = vmatpush1.xpose.msra.mxu0 0.0
    %217 = vmatprep.subr.mxu0 0.0
    %218 = vmatpush1.xpose.msra.mxu0 0.0
    %219 = vmatprep.subr.mxu0 0.0
    %220 = vmatpush1.xpose.msra.mxu0 0.0
    %221 = vmatprep.subr.mxu0 0.0
    %222 = vmatpush1.xpose.msra.mxu0 0.0
    %223 = vmatprep.subr.mxu0 0.0
    %224 = vmatpush1.xpose.msra.mxu0 0.0
    %225 = vmatprep.subr.mxu0 0.0
    %226 = vmatpush1.xpose.msra.mxu0 0.0
    %227 = vmatprep.subr.mxu0 0.0
    %228 = vmatpush1.xpose.msra.mxu0 0.0
    %229 = vmatprep.subr.mxu0 0.0
    %230 = vmatpush1.xpose.msra.mxu0 0.0
    %231 = vmatprep.subr.mxu0 0.0
    %232 = vmatpush1.xpose.msra.mxu0 0.0
    %233 = vmatprep.subr.mxu0 0.0
    %234 = vmatpush1.xpose.msra.mxu0 0.0
    %235 = vmatprep.subr.mxu0 0.0
    %236 = vmatpush1.xpose.msra.mxu0 0.0
    %237 = vmatprep.subr.mxu0 0.0
    %238 = vmatpush1.xpose.msra.mxu0 0.0
    %239 = vmatprep.subr.mxu0 0.0
    %240 = vmatpush1.xpose.msra.mxu0 0.0
    %241 = vmatprep.subr.mxu0 0.0
    %242 = vmatpush1.xpose.msra.mxu0 0.0
    %243 = vmatprep.subr.mxu0 0.0
    %244 = vmatpush1.xpose.msra.mxu0 0.0
    %245 = vmatprep.subr.mxu0 0.0
    %246 = vmatpush1.xpose.msra.mxu0 0.0
    %247 = vmatprep.subr.mxu0 0.0
    %248 = vmatpush1.xpose.msra.mxu0 0.0
    %249 = vmatprep.subr.mxu0 0.0
    %250 = vmatpush1.xpose.msra.mxu0 0.0
    %251 = vmatprep.mubr.f32.mxu0 0.0
    %252 = vmatmul.mubr.f32.gmra.mrb[0].mxu0 %v137
    %v253 = vpop.f32.mrb[0].mxu0
    %v254 = vadd.f32 %v58, %v253
    %v255 = vpop.f32.mrb[0].mxu0
    %256 = vmatprep.mubr.f32.mxu0 0.0
    %257 = vmatmul.mubr.f32.gmra.mrb[0].mxu0 %v140
    %v258 = vpop.f32.mrb[0].mxu0
    %v259 = vadd.f32 %v63, %v258
    %v260 = vpop.f32.mrb[0].mxu0
    %261 = vmatprep.mubr.f32.mxu0 0.0
    %262 = vmatmul.mubr.f32.gmra.mrb[0].mxu0 %v143
    %v263 = vpop.f32.mrb[0].mxu0
    %v264 = vadd.f32 %v68, %v263
    %v265 = vpop.f32.mrb[0].mxu0
    %266 = vmatprep.mubr.f32.mxu0 0.0
    %267 = vmatmul.mubr.f32.gmra.mrb[0].mxu0 %v146
    %v268 = vpop.f32.mrb[0].mxu0
    %v269 = vadd.f32 %v73, %v268
    %v270 = vpop.f32.mrb[0].mxu0
    %271 = vmatprep.mubr.f32.mxu0 0.0
    %272 = vmatmul.mubr.f32.gmra.mrb[0].mxu0 %v149
    %v273 = vpop.f32.mrb[0].mxu0
    %v274 = vadd.f32 %v78, %v273
    %v275 = vpop.f32.mrb[0].mxu0
    %276 = vmatprep.mubr.f32.mxu0 0.0
    %277 = vmatmul.mubr.f32.gmra.mrb[0].mxu0 %v152
    %v278 = vpop.f32.mrb[0].mxu0
    %v279 = vadd.f32 %v83, %v278
    %v280 = vpop.f32.mrb[0].mxu0
    %281 = vmatprep.mubr.f32.mxu0 0.0
    %282 = vmatmul.mubr.f32.gmra.mrb[0].mxu0 %v155
    %v283 = vpop.f32.mrb[0].mxu0
    %v284 = vadd.f32 %v88, %v283
    %v285 = vpop.f32.mrb[0].mxu0
    %286 = vmatprep.mubr.f32.mxu0 0.0
    %287 = vmatmul.mubr.f32.gmra.mrb[0].mxu0 %v158
    %v288 = vpop.f32.mrb[0].mxu0
    %v289 = vadd.f32 %v93, %v288
    %v290 = vpop.f32.mrb[0].mxu0
    %291 = vmatprep.mubr.f32.mxu0 0.0
    %292 = vmatmul.mubr.f32.gmra.mrb[0].mxu0 %v161
    %v293 = vpop.f32.mrb[0].mxu0
    %v294 = vadd.f32 %v98, %v293
    %v295 = vpop.f32.mrb[0].mxu0
    %296 = vmatprep.mubr.f32.mxu0 0.0
    %297 = vmatmul.mubr.f32.gmra.mrb[0].mxu0 %v164
    %v298 = vpop.f32.mrb[0].mxu0
    %v299 = vadd.f32 %v103, %v298
    %v300 = vpop.f32.mrb[0].mxu0
    %301 = vmatprep.mubr.f32.mxu0 0.0
    %302 = vmatmul.mubr.f32.gmra.mrb[0].mxu0 %v167
    %v303 = vpop.f32.mrb[0].mxu0
    %v304 = vadd.f32 %v108, %v303
    %v305 = vpop.f32.mrb[0].mxu0
    %306 = vmatprep.mubr.f32.mxu0 0.0
    %307 = vmatmul.mubr.f32.gmra.mrb[0].mxu0 %v170
    %v308 = vpop.f32.mrb[0].mxu0
    %v309 = vadd.f32 %v113, %v308
    %v310 = vpop.f32.mrb[0].mxu0
    %311 = vmatprep.mubr.f32.mxu0 0.0
    %312 = vmatmul.mubr.f32.gmra.mrb[0].mxu0 %v173
    %v313 = vpop.f32.mrb[0].mxu0
    %v314 = vadd.f32 %v118, %v313
    %v315 = vpop.f32.mrb[0].mxu0
    %316 = vmatprep.mubr.f32.mxu0 0.0
    %317 = vmatmul.mubr.f32.gmra.mrb[0].mxu0 %v176
    %v318 = vpop.f32.mrb[0].mxu0
    %v319 = vadd.f32 %v123, %v318
    %v320 = vpop.f32.mrb[0].mxu0
    %321 = vmatprep.mubr.f32.mxu0 0.0
    %322 = vmatmul.mubr.f32.gmra.mrb[0].mxu0 %v179
    %v323 = vpop.f32.mrb[0].mxu0
    %v324 = vadd.f32 %v128, %v323
    %v325 = vpop.f32.mrb[0].mxu0
    %326 = vmatprep.mubr.f32.mxu0 0.0
    %327 = vmatmul.mubr.f32.gmra.mrb[0].mxu0 %v182
    %v328 = vpop.f32.mrb[0].mxu0
    %v329 = vadd.f32 %v133, %v328
    %v330 = vpop.f32.mrb[0].mxu0
    %331 = vdwg.mxu0
    %v332 = vmax.f32 %v254, 0.0
    %v333 = vmax.f32 %v259, 0.0
    %v334 = vmax.f32 %v264, 0.0
    %v335 = vmax.f32 %v269, 0.0
    %v336 = vmax.f32 %v274, 0.0
    %v337 = vmax.f32 %v279, 0.0
    %v338 = vmax.f32 %v284, 0.0
    %v339 = vmax.f32 %v289, 0.0
    %v340 = vmax.f32 %v294, 0.0
    %v341 = vmax.f32 %v299, 0.0
    %v342 = vmax.f32 %v304, 0.0
    %v343 = vmax.f32 %v309, 0.0
    %v344 = vmax.f32 %v314, 0.0
    %v345 = vmax.f32 %v319, 0.0
    %v346 = vmax.f32 %v324, 0.0
    %v347 = vmax.f32 %v329, 0.0
    %v348 = vld [vmem:[%s3] sm:$0x1]
    %s349 = sld [smem:[#allocation2]]
    %v350 = vstv %s349
    %351 = vmatprep.subr.mxu0 0.0
    %352 = vmatpush1.msra.mxu0 %v332
    %353 = vmatprep.subr.mxu0 0.0
    %354 = vmatpush1.msra.mxu0 %v333
    %355 = vmatprep.subr.mxu0 0.0
    %356 = vmatpush1.msra.mxu0 %v334
    %357 = vmatprep.subr.mxu0 0.0
    %358 = vmatpush1.msra.mxu0 %v335
    %359 = vmatprep.subr.mxu0 0.0
    %360 = vmatpush1.msra.mxu0 %v336
    %361 = vmatprep.subr.mxu0 0.0
    %362 = vmatpush1.msra.mxu0 %v337
    %363 = vmatprep.subr.mxu0 0.0
    %364 = vmatpush1.msra.mxu0 %v338
    %365 = vmatprep.subr.mxu0 0.0
    %366 = vmatpush1.msra.mxu0 %v339
    %367 = vmatprep.subr.mxu0 0.0
    %368 = vmatpush1.msra.mxu0 %v340
    %369 = vmatprep.subr.mxu0 0.0
    %370 = vmatpush1.msra.mxu0 %v341
    %371 = vmatprep.subr.mxu0 0.0
    %372 = vmatpush1.msra.mxu0 %v342
    %373 = vmatprep.subr.mxu0 0.0
    %374 = vmatpush1.msra.mxu0 %v343
    %375 = vmatprep.subr.mxu0 0.0
    %376 = vmatpush1.msra.mxu0 %v344
    %377 = vmatprep.subr.mxu0 0.0
    %378 = vmatpush1.msra.mxu0 %v345
    %379 = vmatprep.subr.mxu0 0.0
    %380 = vmatpush1.msra.mxu0 %v346
    %381 = vmatprep.subr.mxu0 0.0
    %382 = vmatpush1.msra.mxu0 %v347
    %383 = vmatprep.subr.mxu0 0.0
    %384 = vmatpush1.msra.mxu0 0.0
    %385 = vmatprep.subr.mxu0 0.0
    %386 = vmatpush1.msra.mxu0 0.0
    %387 = vmatprep.subr.mxu0 0.0
    %388 = vmatpush1.msra.mxu0 0.0
    %389 = vmatprep.subr.mxu0 0.0
    %390 = vmatpush1.msra.mxu0 0.0
    %391 = vmatprep.subr.mxu0 0.0
    %392 = vmatpush1.msra.mxu0 0.0
    %393 = vmatprep.subr.mxu0 0.0
    %394 = vmatpush1.msra.mxu0 0.0
    %395 = vmatprep.subr.mxu0 0.0
    %396 = vmatpush1.msra.mxu0 0.0
    %397 = vmatprep.subr.mxu0 0.0
    %398 = vmatpush1.msra.mxu0 0.0
    %399 = vmatprep.subr.mxu0 0.0
    %400 = vmatpush1.msra.mxu0 0.0
    %401 = vmatprep.subr.mxu0 0.0
    %402 = vmatpush1.msra.mxu0 0.0
    %403 = vmatprep.subr.mxu0 0.0
    %404 = vmatpush1.msra.mxu0 0.0
    %405 = vmatprep.subr.mxu0 0.0
    %406 = vmatpush1.msra.mxu0 0.0
    %407 = vmatprep.subr.mxu0 0.0
    %408 = vmatpush1.msra.mxu0 0.0
    %409 = vmatprep.subr.mxu0 0.0
    %410 = vmatpush1.msra.mxu0 0.0
    %411 = vmatprep.subr.mxu0 0.0
    %412 = vmatpush1.msra.mxu0 0.0
    %413 = vmatprep.subr.mxu0 0.0
    %414 = vmatpush1.msra.mxu0 0.0
    %415 = vmatprep.mubr.f32.mxu0 0.0
    %416 = vmatmul.mubr.f32.gmra.mrb[0].mxu0 %v348
    %v417 = vpop.f32.mrb[0].mxu0
    %v418 = vadd.f32 %v350, %v417
    %v419 = vpop.f32.mrb[0].mxu0
    %420 = vdwg.mxu0
    %vm421 = vcmask 57344
    %422 = vst.msk [vmem:[#allocation3] sm:$0x1] %vm421, %v418
    // Predicated region
    $region22: #{tpu_custom_call.1} parent=1 // pred_check
      _
    $region23: #{tpu_custom_call.1} parent=1 // pred_check_branch
      %424 = sbr.rel (0) target = $region25
    $region24: #{tpu_custom_call.1} parent=1 // pred_region
      %s426 = ssub.s32 16, 16
      %427 = vsyncadd [#allocation4], %s426
      %s429 = sshll.u32 [#allocation3], 4
      %s430 = int_to_ptr.vmem [resolvable:$true] %s429
      %432 = dma.vmem_to_hbm [thread:$0]  %s430, 16, %s5, [#allocation4]
    $region25: #{tpu_custom_call.1} parent=1 // pred_fallthru
      _
    // Predicated region
    $region26: #{tpu_custom_call.1} parent=1 // pred_check
      _
    $region27: #{tpu_custom_call.1} parent=1 // pred_check_branch
      %434 = sbr.rel (0) target = $region29
    $region28: #{tpu_custom_call.1} parent=1 // pred_region
      %435 = dma.done [#allocation4], 16
    $region29: #{tpu_custom_call.1} parent=1 // pred_fallthru
      _
    %436 = vsyncpa [#allocation4], 1

</llo_original>
